<compile_context>
chip_gen: v5e
topology: v5e:2x2
jax: 0.10.0
libtpu: 0.0.40
codegen_flags: <defaults>
</compile_context>

<pallas_src>
import math
from functools import partial

import jax
import jax.numpy as jnp
from jax.experimental import pallas as pl
from jax.experimental.pallas import tpu as pltpu


def _round_up(x, m):
    return ((x + m - 1) // m) * m


def gcn_kernel(adj_ref, xw_ref, isd_ref, b_ref, o_ref, *, xw_resident):
    # grid = (i: destination-row tile [parallel], k: source tile [reduction, last])
    # adj_ref: (tm, tk) bf16      xw_ref: (Np, Fout_p) bf16 if resident,
    #                                     (tk, Fout_p) bf16 if streamed
    # isd_ref: (tm, 1) f32        b_ref: (1, Fout_p) f32
    # o_ref:   (tm, Fout_p) f32   -- doubles as the accumulator (resident over k).
    k = pl.program_id(1)

    @pl.when(k == 0)
    def _init():
        o_ref[...] = jnp.zeros_like(o_ref)

    if xw_resident:
        tk = adj_ref.shape[1]
        start = pl.multiple_of(k * tk, tk)
        xw_blk = xw_ref[pl.ds(start, tk), :]
    else:
        xw_blk = xw_ref[...]

    # Single lane-dense MXU matmul per step (bf16 in, f32 accumulate).
    o_ref[...] += jnp.dot(adj_ref[...], xw_blk,
                          preferred_element_type=jnp.float32)

    @pl.when(k == pl.num_programs(1) - 1)
    def _finalize():
        isd = isd_ref[...]                                   # (tm, 1) 1/sqrt(deg)
        deg = jnp.where(isd > 0.0, 1.0 / (isd * isd), 0.0)   # padded rows -> 0
        # Destination-side normalization + per-message bias (deg * bias).
        o_ref[...] = o_ref[...] * isd + deg * b_ref[...]


def graph_convolution(adj, deg, x, weight, bias, *, tm=512, tk=512,
                      xw_resident=None):
    """adj[dst, src] in {0,1}, deg = in-degrees (row sums of adj), x (N, Fin),
    weight (Fin, Fout), bias (Fout,).  Returns (N, Fout) float32."""
    N = adj.shape[0]
    Fin, Fout = weight.shape
    f32, bf16 = jnp.float32, jnp.bfloat16

    # Lane-dense output / fused operand width.
    Fout_p = max(128, _round_up(Fout, 128))

    # Tile sizes: clamp to the (128-aligned) graph size, keep lane/sublane
    # friendly, and round Np up to lcm(tm, tk) so BOTH axes divide evenly.
    n_align = _round_up(max(N, 128), 128)
    tm = _round_up(min(tm, n_align), 128)
    tk = _round_up(min(tk, n_align), 128)
    Np = _round_up(max(N, 128), math.lcm(tm, tk))
    if Np // tm == 1 and (Np // 2) % 128 == 0:
        tm = Np // 2   # >= 2 row tiles so the "parallel" axis feeds both v7x TCs

    # Wrapper-side precompute (once): source-side normalization + W fusion.
    deg_f = deg.astype(f32).reshape(N, 1)
    isd = jnp.where(deg_f > 0, jax.lax.rsqrt(deg_f), 0.0)            # (N, 1)
    w_p = jnp.zeros((Fin, Fout_p), f32).at[:, :Fout].set(weight.astype(f32))
    xw = (x.astype(f32) * isd) @ w_p                                 # (N, Fout_p) f32

    # bf16 streams: adj (0/1 exact in bf16) + xw (halves dominant HBM traffic).
    adj_bf = adj.astype(bf16)
    xw_bf = xw.astype(bf16)

    # Zero-pad to the tile grid (padded rows have isd == 0 -> output rows == 0).
    adj_p = jnp.zeros((Np, Np), bf16).at[:N, :N].set(adj_bf)
    xw_p = jnp.zeros((Np, Fout_p), bf16).at[:N, :].set(xw_bf)
    isd_p = jnp.zeros((Np, 1), f32).at[:N, :].set(isd)
    b_p = jnp.zeros((1, Fout_p), f32).at[0, :Fout].set(bias.astype(f32))

    # Keep xw fully VMEM-resident when it fits (conservative v7x budget).
    xw_bytes = Np * Fout_p * 2
    if xw_resident is None:
        xw_resident = xw_bytes <= 24 * 1024 * 1024

    grid = (Np // tm, Np // tk)

    # VMEM budget: double-buffered adj + xw (or resident xw) + output tile.
    vmem_est = (2 * tm * tk * 2
                + (xw_bytes if xw_resident else 2 * tk * Fout_p * 2)
                + 2 * tm * Fout_p * 4
                + 2 * tm * 4 + Fout_p * 4)
    try:
        vmem_cap = int(pltpu.get_tpu_info().vmem_capacity_bytes)  # 64 MiB v7x, 128 MiB v5e/v6e
    except Exception:
        vmem_cap = 64 * 1024 * 1024
    vmem_limit = int(min(max(2 * vmem_est, 32 * 1024 * 1024), 0.75 * vmem_cap))

    flops = 2 * Np * Np * Fout_p
    bytes_accessed = int(Np * Np * 2
                         + (1 if xw_resident else Np // tm) * Np * Fout_p * 2
                         + Np * Fout_p * 4 + Np * 4 + Fout_p * 4)

    xw_spec = (pl.BlockSpec((Np, Fout_p), lambda i, k: (0, 0)) if xw_resident
               else pl.BlockSpec((tk, Fout_p), lambda i, k: (k, 0)))

    out_p = pl.pallas_call(
        partial(gcn_kernel, xw_resident=xw_resident),
        out_shape=jax.ShapeDtypeStruct((Np, Fout_p), f32),
        grid=grid,
        in_specs=[
            # adj tile; add pipeline_mode=pl.Buffered(3) here if profiling
            # still shows the adj DMA exposed after the tile-size bump.
            pl.BlockSpec((tm, tk), lambda i, k: (i, k)),
            xw_spec,                                           # fused (x/sqrt(deg)) @ W
            pl.BlockSpec((tm, 1), lambda i, k: (i, 0)),        # 1/sqrt(deg) rows
            pl.BlockSpec((1, Fout_p), lambda i, k: (0, 0)),    # bias (resident)
        ],
        out_specs=pl.BlockSpec((tm, Fout_p), lambda i, k: (i, 0)),
        compiler_params=pltpu.CompilerParams(
            dimension_semantics=("parallel", "arbitrary"),
            vmem_limit_bytes=vmem_limit),
        cost_estimate=pl.CostEstimate(
            flops=flops, transcendentals=0, bytes_accessed=bytes_accessed),
    )(adj_p, xw_p, isd_p, b_p)

    return out_p[:N, :Fout]


if __name__ == "__main__":
    key = jax.random.PRNGKey(0)
    k_adj, k_x, k_w, k_b = jax.random.split(key, 4)

    N = 300          # non-multiple of 128 -> exercises padding + ragged tile handling
    input_dim = 32
    output_dim = 64

    # Deterministic synthetic graph: random edges + self-loops so every node
    # has in-degree >= 1 (kernel also guards deg == 0 via isd == 0).
    adj = jax.random.bernoulli(k_adj, p=0.05, shape=(N, N)).astype(jnp.float32)
    adj = jnp.clip(adj + jnp.eye(N, dtype=jnp.float32), 0.0, 1.0)
    deg = jnp.sum(adj, axis=1)   # in_degree[v] with adj[dst, src]

    # Node features and parameters (kaiming_uniform_-style weight; nonzero bias
    # to actually exercise the per-message deg * bias term).
    x = jax.random.normal(k_x, (N, input_dim), dtype=jnp.float32)
    fan_in = output_dim  # PyTorch fan_in for Tensor(input_dim, output_dim)
    bound = (6.0 / fan_in) ** 0.5
    weight = jax.random.uniform(k_w, (input_dim, output_dim), jnp.float32,
                                -bound, bound)
    bias = 0.1 * jax.random.normal(k_b, (output_dim,), dtype=jnp.float32)

    # Pure-JAX f32 reference of the message-passing semantics.
    inv = jnp.where(deg > 0, 1.0 / jnp.sqrt(deg), 0.0)
    a_norm = adj * inv[:, None] * inv[None, :]
    ref = a_norm @ x @ weight + deg[:, None] * bias[None, :]

    # Run both code paths: resident xw with a (3, 3) tiled grid, and the
    # streamed-xw fallback with the default (clamped) large tiles.
    out_a = graph_convolution(adj, deg, x, weight, bias,
                              tm=128, tk=128, xw_resident=True)
    out_b = graph_convolution(adj, deg, x, weight, bias, xw_resident=False)
    out_a, out_b = jax.block_until_ready((out_a, out_b))

    assert out_a.shape == (N, output_dim)
    assert out_b.shape == (N, output_dim)
    # bf16 streaming of adj/xw -> loosened tolerance (adj itself is exact).
    assert jnp.allclose(out_a, ref, rtol=3e-2, atol=3e-2), "resident-xw mismatch"
    assert jnp.allclose(out_b, ref, rtol=3e-2, atol=3e-2), "streamed-xw mismatch"

    print("KERNEL_OK")
</pallas_src>

<mosaic_0001>
module attributes {stable_mosaic.version = 11 : i64} {
  func.func @gcn_kernel(%arg0: i32, %arg1: i32, %arg2: memref<128x128xbf16, #tpu.memory_space<vmem>>, %arg3: memref<384x128xbf16, #tpu.memory_space<vmem>>, %arg4: memref<128x1xf32, #tpu.memory_space<vmem>>, %arg5: memref<1x128xf32, #tpu.memory_space<vmem>>, %arg6: memref<128x128xf32, #tpu.memory_space<vmem>>) attributes {dimension_semantics = [#tpu.dimension_semantics<parallel>, #tpu.dimension_semantics<arbitrary>], iteration_bounds = array<i64: 3, 3>, scalar_prefetch = 0 : i64, scratch_operands = 0 : i64, tpu.core_type = #tpu.core_type<tc>, window_params = [{transform_indices = @transform_0, window_bounds = array<i64: 128, 128>}, {pipeline_mode = #tpu.pipeline_mode<synchronous>, transform_indices = @transform_1, window_bounds = array<i64: 384, 128>}, {transform_indices = @transform_2, window_bounds = array<i64: 128, 1>}, {pipeline_mode = #tpu.pipeline_mode<synchronous>, transform_indices = @transform_3, window_bounds = array<i64: 1, 128>}, {transform_indices = @transform_4, window_bounds = array<i64: 128, 128>}]} {
    %c0_i32 = arith.constant 0 : i32
    %0 = arith.cmpi eq, %arg1, %c0_i32 : i32
    %1 = arith.extui %0 : i1 to i32
    %c0_i32_0 = arith.constant 0 : i32
    %2 = arith.cmpi ne, %1, %c0_i32_0 : i32
    scf.if %2 {
      %cst_8 = arith.constant 0.000000e+00 : f32
      %15 = vector.broadcast %cst_8 : f32 to vector<128x128xf32>
      %c0_9 = arith.constant 0 : index
      %c0_10 = arith.constant 0 : index
      %16 = vector.load %arg6[%c0_9, %c0_10] : memref<128x128xf32, #tpu.memory_space<vmem>>, vector<128x128xf32>
      tpu.vector_store %arg6[%c0_9, %c0_10], %15 {strides = array<i32>} : memref<128x128xf32, #tpu.memory_space<vmem>>, vector<128x128xf32>,
    } else {
    }
    %c128_i32 = arith.constant 128 : i32
    %3 = arith.muli %arg1, %c128_i32 : i32
    %4 = tpu.assume_multiple %3, 128 : i32
    %5 = arith.index_cast %4 : i32 to index
    %c0 = arith.constant 0 : index
    %6 = vector.load %arg3[%5, %c0] : memref<384x128xbf16, #tpu.memory_space<vmem>>, vector<128x128xbf16>
    %c0_1 = arith.constant 0 : index
    %c0_2 = arith.constant 0 : index
    %7 = vector.load %arg6[%c0_1, %c0_2] : memref<128x128xf32, #tpu.memory_space<vmem>>, vector<128x128xf32>
    %c0_3 = arith.constant 0 : index
    %c0_4 = arith.constant 0 : index
    %8 = vector.load %arg2[%c0_3, %c0_4] : memref<128x128xbf16, #tpu.memory_space<vmem>>, vector<128x128xbf16>
    %cst = arith.constant dense<0.000000e+00> : vector<128x128xf32>
    %9 = tpu.matmul %8, %6, %cst {dimension_numbers = #tpu.dot_dimension_numbers<[1], [0], [0], [1], [0, 0, 1, 1], [], []>} : vector<128x128xbf16>, vector<128x128xbf16>, vector<128x128xf32> -> vector<128x128xf32>
    %10 = arith.addf %7, %9 : vector<128x128xf32>
    %c0_5 = arith.constant 0 : index
    %c0_6 = arith.constant 0 : index
    %11 = vector.load %arg6[%c0_5, %c0_6] : memref<128x128xf32, #tpu.memory_space<vmem>>, vector<128x128xf32>
    tpu.vector_store %arg6[%c0_5, %c0_6], %10 {strides = array<i32>} : memref<128x128xf32, #tpu.memory_space<vmem>>, vector<128x128xf32>,
    %c2_i32 = arith.constant 2 : i32
    %12 = arith.cmpi eq, %arg1, %c2_i32 : i32
    %13 = arith.extui %12 : i1 to i32
    %c0_i32_7 = arith.constant 0 : i32
    %14 = arith.cmpi ne, %13, %c0_i32_7 : i32
    scf.if %14 {
      %c0_8 = arith.constant 0 : index
      %c0_9 = arith.constant 0 : index
      %15 = vector.load %arg4[%c0_8, %c0_9] : memref<128x1xf32, #tpu.memory_space<vmem>>, vector<128x1xf32>
      %cst_10 = arith.constant 0.000000e+00 : f32
      %16 = vector.broadcast %cst_10 : f32 to vector<128x1xf32>
      %17 = arith.cmpf ogt, %15, %16 : vector<128x1xf32>
      %18 = arith.mulf %15, %15 : vector<128x1xf32>
      %cst_11 = arith.constant 1.000000e+00 : f32
      %19 = vector.broadcast %cst_11 : f32 to vector<128x1xf32>
      %20 = arith.divf %19, %18 : vector<128x1xf32>
      %cst_12 = arith.constant 0.000000e+00 : f32
      %21 = vector.broadcast %cst_12 : f32 to vector<128x1xf32>
      %22 = arith.select %17, %20, %21 : vector<128x1xi1>, vector<128x1xf32>
      %c0_13 = arith.constant 0 : index
      %c0_14 = arith.constant 0 : index
      %23 = vector.load %arg6[%c0_13, %c0_14] : memref<128x128xf32, #tpu.memory_space<vmem>>, vector<128x128xf32>
      %24 = vector.broadcast %15 : vector<128x1xf32> to vector<128x128xf32>
      %25 = arith.mulf %23, %24 : vector<128x128xf32>
      %c0_15 = arith.constant 0 : index
      %c0_16 = arith.constant 0 : index
      %26 = vector.load %arg5[%c0_15, %c0_16] : memref<1x128xf32, #tpu.memory_space<vmem>>, vector<1x128xf32>
      %27 = vector.broadcast %22 : vector<128x1xf32> to vector<128x128xf32>
      %28 = vector.broadcast %26 : vector<1x128xf32> to vector<128x128xf32>
      %29 = arith.mulf %27, %28 : vector<128x128xf32>
      %30 = arith.addf %25, %29 : vector<128x128xf32>
      %c0_17 = arith.constant 0 : index
      %c0_18 = arith.constant 0 : index
      %31 = vector.load %arg6[%c0_17, %c0_18] : memref<128x128xf32, #tpu.memory_space<vmem>>, vector<128x128xf32>
      tpu.vector_store %arg6[%c0_17, %c0_18], %30 {strides = array<i32>} : memref<128x128xf32, #tpu.memory_space<vmem>>, vector<128x128xf32>,
    } else {
    }
    return
  }
  func.func @transform_0(%arg0: i32, %arg1: i32) -> (i32, i32) {
    %c0_i32 = arith.constant 0 : i32
    return %arg0, %arg1 : i32, i32
  }
  func.func @transform_1(%arg0: i32, %arg1: i32) -> (i32, i32) {
    %c0_i32 = arith.constant 0 : i32
    %c0_i32_0 = arith.constant 0 : i32
    %c0_i32_1 = arith.constant 0 : i32
    return %c0_i32, %c0_i32_0 : i32, i32
  }
  func.func @transform_2(%arg0: i32, %arg1: i32) -> (i32, i32) {
    %c0_i32 = arith.constant 0 : i32
    %c0_i32_0 = arith.constant 0 : i32
    return %arg0, %c0_i32 : i32, i32
  }
  func.func @transform_3(%arg0: i32, %arg1: i32) -> (i32, i32) {
    %c0_i32 = arith.constant 0 : i32
    %c0_i32_0 = arith.constant 0 : i32
    %c0_i32_1 = arith.constant 0 : i32
    return %c0_i32, %c0_i32_0 : i32, i32
  }
  func.func @transform_4(%arg0: i32, %arg1: i32) -> (i32, i32) {
    %c0_i32 = arith.constant 0 : i32
    %c0_i32_0 = arith.constant 0 : i32
    return %arg0, %c0_i32 : i32, i32
  }
}

</mosaic_0001>

<llo_original>
// kernel: tpu_custom_call.1
$region0: #{tpu_custom_call.1}
  #allocation0 [shape = 'u32[]', space=smem, size = 0x4, offset = 0x4, fixed_abs, tag = 'smem constant byte address 0x4 - core index']
  #allocation1 [shape = 'u32[72,128]{1,0:T(1,128)}', space=vmem, size = 0x9000, scoped, tag = 'internal scratch']
  %s0 = inlined_call_operand.hbm [shape: bf16[384,384], index: 0, kind: input, shape index: {}]
  %s1 = inlined_call_operand.vmem [shape: bf16[384,128], index: 1, kind: input, shape index: {}]
  %s2 = inlined_call_operand.vmem [shape: f32[384,1], index: 2, kind: input, shape index: {}]
  %s3 = inlined_call_operand.vmem [shape: f32[1,128], index: 3, kind: input, shape index: {}]
  %s4 = inlined_call_operand.hbm [shape: f32[384,128], index: 4, kind: output, shape index: {}]
  %s5 = sld [smem:[#allocation0]]
  $region61: #{tpu_custom_call.1} parent=0
    _
  %s7 = ssub.s32 1, %s5
  %s8 = scalar_select 0, %s7, %s5
  $region1: #{tpu_custom_call.1} parent=0
    #allocation2 [shape = 'u8[65536]{0}', space=vmem, size = 0x10000, scoped, tag = 'input window, operand 0']
    #allocation3 [shape = 's32[2]{0}', space=sflag, size = 0x8, scoped, tag = 'scoped memory for tpu_custom_call.1']
    #allocation4 [shape = 's32[2]{0}', space=sflag, size = 0x8, scoped, tag = 'scoped memory for tpu_custom_call.1']
    #allocation5 [shape = 'u8[131072]{0}', space=vmem, size = 0x20000, scoped, tag = 'output window, operand 0']
    %9 = vsyncpa [#allocation3], 0
    %s10 = scalar_lea.sflag [#allocation3], 1
    %11 = vsyncpa %s10, 0
    %12 = vsyncpa [#allocation4], 0
    %s13 = scalar_lea.sflag [#allocation4], 1
    %14 = vsyncpa %s13, 0
    loop: start=0, step=1, limit=11
    $region2: #{tpu_custom_call.1} parent=1 // loop_pre_header
      _
    $region3: #{tpu_custom_call.1} parent=1 // loop_header
      %s16 = sphi 0, %s20
      %p17 = scmp.ge.s32.totalorder %s16, 11
      %s23 = sphi 0, %s35
      %s24 = sphi 0, %s31
      %s25 = sphi 0, %s23
      %s26 = sphi 0, %s24
      %s27 = sphi 0, %s25
      %s28 = sphi 0, %s26
      %s40 = sphi 0, %s42
      %s43 = sphi 0, %s40
      %s44 = sphi 0, %s43
      %s60 = sphi 0, %s44
      %s64 = sphi 0, %s64
      %s66 = sphi 0, %s64
      %s67 = sphi 0, %s66
      %s81 = sphi 0, %s67
      %s87 = sphi 0, %s89
      %s90 = sphi 0, %s87
      %s91 = sphi 0, %s90
      %s107 = sphi 0, %s91
      %s111 = sphi 0, %s111
      %s113 = sphi 0, %s111
      %s114 = sphi 0, %s113
      %s128 = sphi 0, %s114
      %s134 = sphi 0, %s136
      %s137 = sphi 0, %s134
      %s138 = sphi 0, %s137
      %s154 = sphi 0, %s138
    $region4: #{tpu_custom_call.1} parent=1 // loop_header_branch
      %19 = sbr.rel (%p17) target = $region8
    $region5: #{tpu_custom_call.1} parent=1 // loop_body
      %s21 = ssub.s32 %s16, 1
      %s22 = ssub.s32 %s16, 2
      %s29 = sadd.s32 1, %s24
      %p30 = scmp.ge.s32.totalorder %s29, 3
      %s31 = scalar_select %p30, 0, %s29
      %s32 = sadd.s32 1, %s23
      %s33 = scalar_select %p30, %s32, %s23
      %p34 = scmp.ge.s32.totalorder %s33, 3
      %s35 = scalar_select %p34, 0, %s33
      %s36 = ssub.s32 %s23, %s35
      %s37 = ssub.s32 %s24, %s31
      %s38 = sor.u32 %s36, %s37
      %p39 = scmp.eq.s32.totalorder %s38, 0
      %s41 = sadd.s32 %s40, 1
      %s42 = scalar_select %p39, %s40, %s41
      %p45 = pneg %p39
      %p46 = scmp.eq.s32.totalorder %s16, 8
      %p47 = por %p45, %p46
      %p48 = scmp.ne.s32.totalorder %s40, %s43
      %p49 = scmp.eq.s32.totalorder %s16, 0
      %p50 = por %p48, %p49
      %p51 = scmp.ne.s32.totalorder %s40, %s43
      %p52 = scmp.eq.s32.totalorder %s21, 8
      %p53 = por %p51, %p52
      %p54 = scmp.ne.s32.totalorder %s43, %s44
      %p55 = scmp.eq.s32.totalorder %s21, 0
      %p56 = por %p54, %p55
      %p57 = scmp.ne.s32.totalorder %s43, %s44
      %p58 = scmp.eq.s32.totalorder %s22, 8
      %p59 = por %p57, %p58
      %p61 = scmp.ne.s32.totalorder %s44, %s60
      %p62 = scmp.eq.s32.totalorder %s22, 0
      %p63 = por %p61, %p62
      %s65 = sadd.s32 %s64, 1
      %p68 = scmp.eq.s32.totalorder %s16, 8
      %p69 = scmp.ne.s32.totalorder %s64, %s66
      %p70 = scmp.eq.s32.totalorder %s16, 0
      %p71 = por %p69, %p70
      %p72 = scmp.ne.s32.totalorder %s64, %s66
      %p73 = scmp.eq.s32.totalorder %s21, 8
      %p74 = por %p72, %p73
      %p75 = scmp.ne.s32.totalorder %s66, %s67
      %p76 = scmp.eq.s32.totalorder %s21, 0
      %p77 = por %p75, %p76
      %p78 = scmp.ne.s32.totalorder %s66, %s67
      %p79 = scmp.eq.s32.totalorder %s22, 8
      %p80 = por %p78, %p79
      %p82 = scmp.ne.s32.totalorder %s67, %s81
      %p83 = scmp.eq.s32.totalorder %s22, 0
      %p84 = por %p82, %p83
      %s85 = ssub.s32 %s23, %s35
      %p86 = scmp.eq.s32.totalorder %s85, 0
      %s88 = sadd.s32 %s87, 1
      %s89 = scalar_select %p86, %s87, %s88
      %p92 = pneg %p86
      %p93 = scmp.eq.s32.totalorder %s16, 8
      %p94 = por %p92, %p93
      %p95 = scmp.ne.s32.totalorder %s87, %s90
      %p96 = scmp.eq.s32.totalorder %s16, 0
      %p97 = por %p95, %p96
      %p98 = scmp.ne.s32.totalorder %s87, %s90
      %p99 = scmp.eq.s32.totalorder %s21, 8
      %p100 = por %p98, %p99
      %p101 = scmp.ne.s32.totalorder %s90, %s91
      %p102 = scmp.eq.s32.totalorder %s21, 0
      %p103 = por %p101, %p102
      %p104 = scmp.ne.s32.totalorder %s90, %s91
      %p105 = scmp.eq.s32.totalorder %s22, 8
      %p106 = por %p104, %p105
      %p108 = scmp.ne.s32.totalorder %s91, %s107
      %p109 = scmp.eq.s32.totalorder %s22, 0
      %p110 = por %p108, %p109
      %s112 = sadd.s32 %s111, 1
      %p115 = scmp.eq.s32.totalorder %s16, 8
      %p116 = scmp.ne.s32.totalorder %s111, %s113
      %p117 = scmp.eq.s32.totalorder %s16, 0
      %p118 = por %p116, %p117
      %p119 = scmp.ne.s32.totalorder %s111, %s113
      %p120 = scmp.eq.s32.totalorder %s21, 8
      %p121 = por %p119, %p120
      %p122 = scmp.ne.s32.totalorder %s113, %s114
      %p123 = scmp.eq.s32.totalorder %s21, 0
      %p124 = por %p122, %p123
      %p125 = scmp.ne.s32.totalorder %s113, %s114
      %p126 = scmp.eq.s32.totalorder %s22, 8
      %p127 = por %p125, %p126
      %p129 = scmp.ne.s32.totalorder %s114, %s128
      %p130 = scmp.eq.s32.totalorder %s22, 0
      %p131 = por %p129, %p130
      %s132 = ssub.s32 %s23, %s35
      %p133 = scmp.eq.s32.totalorder %s132, 0
      %s135 = sadd.s32 %s134, 1
      %s136 = scalar_select %p133, %s134, %s135
      %p139 = pneg %p133
      %p140 = scmp.eq.s32.totalorder %s16, 8
      %p141 = por %p139, %p140
      %p142 = scmp.ne.s32.totalorder %s134, %s137
      %p143 = scmp.eq.s32.totalorder %s16, 0
      %p144 = por %p142, %p143
      %p145 = scmp.ne.s32.totalorder %s134, %s137
      %p146 = scmp.eq.s32.totalorder %s21, 8
      %p147 = por %p145, %p146
      %p148 = scmp.ne.s32.totalorder %s137, %s138
      %p149 = scmp.eq.s32.totalorder %s21, 0
      %p150 = por %p148, %p149
      %p151 = scmp.ne.s32.totalorder %s137, %s138
      %p152 = scmp.eq.s32.totalorder %s22, 8
      %p153 = por %p151, %p152
      %p155 = scmp.ne.s32.totalorder %s138, %s154
      %p156 = scmp.eq.s32.totalorder %s22, 0
      %p157 = por %p155, %p156
      %p158 = scmp.le.s32.totalorder 1, %s16
      %p159 = scmp.lt.s32.totalorder %s16, 10
      %p160 = pnand %p158, %p159
      %p161 = pneg %p160
      // Predicated region
      $region9: #{tpu_custom_call.1} parent=5 // pred_check
        _
      $region10: #{tpu_custom_call.1} parent=5 // pred_check_branch
        %163 = sbr.rel (%p160) target = $region12
      $region11: #{tpu_custom_call.1} parent=5 // pred_region
        %s164 = ssub.s32 %s16, 1
        // Predicated region
        $region13: #{tpu_custom_call.1} parent=11 // pred_check
          %p165 = pneg %p77
        $region14: #{tpu_custom_call.1} parent=11 // pred_check_branch
          %167 = sbr.rel (%p165) target = $region16
        $region15: #{tpu_custom_call.1} parent=11 // pred_region
          _
        $region16: #{tpu_custom_call.1} parent=11 // pred_fallthru
          _
        // Predicated region
        $region17: #{tpu_custom_call.1} parent=11 // pred_check
          %p168 = pneg %p124
        $region18: #{tpu_custom_call.1} parent=11 // pred_check_branch
          %170 = sbr.rel (%p168) target = $region20
        $region19: #{tpu_custom_call.1} parent=11 // pred_region
          _
        $region20: #{tpu_custom_call.1} parent=11 // pred_fallthru
          _
      $region12: #{tpu_custom_call.1} parent=5 // pred_fallthru
        _
      %p171 = scmp.lt.s32.totalorder %s16, 9
      // Predicated region
      $region21: #{tpu_custom_call.1} parent=5 // pred_check
        %p172 = pneg %p171
      $region22: #{tpu_custom_call.1} parent=5 // pred_check_branch
        %174 = sbr.rel (%p172) target = $region24
      $region23: #{tpu_custom_call.1} parent=5 // pred_region
        // Predicated region
        $region25: #{tpu_custom_call.1} parent=23 // pred_check
          %p175 = pneg %p50
        $region26: #{tpu_custom_call.1} parent=23 // pred_check_branch
          %177 = sbr.rel (%p175) target = $region28
        $region27: #{tpu_custom_call.1} parent=23 // pred_region
          %s178 = sand.u32 %s40, 1
          %s179 = scalar_lea.sflag [#allocation3], %s178
          %s180 = sand.u32 %s40, 1
          %s181 = smul.addr %s180, 64
          %s182 = scalar_lea.vmem [#allocation2], %s181
          %s183 = smul.u32 16, %s23
          %185 = vsyncadd %s179, 0
          %s186 = smul.addr %s183, 3
          %s187 = sadd.s32 %s24, %s186
          %s188 = smul.addr %s187, 4
          %s189 = scalar_lea.hbm %s0, %s188
          %s190 = sshll.u32 %s189, 4
          %s191 = int_to_ptr.hbm [resolvable:$true] %s190
          %s192 = sshll.u32 %s182, 4
          %s193 = int_to_ptr.vmem [resolvable:$true] %s192
          %198 = dma.hbm_to_vmem [thread:$0]  %s191, 1024, %s193, %s179, 192, 64, 4
        $region28: #{tpu_custom_call.1} parent=23 // pred_fallthru
          _
        // Predicated region
        $region29: #{tpu_custom_call.1} parent=23 // pred_check
          %p199 = pneg %p97
        $region30: #{tpu_custom_call.1} parent=23 // pred_check_branch
          %201 = sbr.rel (%p199) target = $region32
        $region31: #{tpu_custom_call.1} parent=23 // pred_region
          %s202 = smul.u32 16, %s23
          %p203 = scmp.lt.s32.totalorder %s202, 47
          %s204 = scalar_select %p203, %s202, 47
          %s205 = smul.addr %s204, 8
          %s206 = scalar_lea.vmem %s2, %s205
          %s207 = smul.u32 16, %s23
        $region32: #{tpu_custom_call.1} parent=23 // pred_fallthru
          _
      $region24: #{tpu_custom_call.1} parent=5 // pred_fallthru
        _
      %p208 = scmp.le.s32.totalorder 1, %s16
      %p209 = scmp.lt.s32.totalorder %s16, 10
      %p210 = pnand %p208, %p209
      %p211 = pneg %p210
      // Predicated region
      $region33: #{tpu_custom_call.1} parent=5 // pred_check
        _
      $region34: #{tpu_custom_call.1} parent=5 // pred_check_branch
        %213 = sbr.rel (%p210) target = $region36
      $region35: #{tpu_custom_call.1} parent=5 // pred_region
        %s214 = ssub.s32 %s16, 1
        %s215 = sand.u32 %s43, 1
        %s216 = scalar_lea.sflag [#allocation3], %s215
        %s217 = sand.u32 %s43, 1
        %s218 = smul.addr %s217, 64
        %s219 = scalar_lea.vmem [#allocation2], %s218
        // Predicated region
        $region37: #{tpu_custom_call.1} parent=35 // pred_check
          %p220 = pneg %p56
        $region38: #{tpu_custom_call.1} parent=35 // pred_check_branch
          %222 = sbr.rel (%p220) target = $region40
        $region39: #{tpu_custom_call.1} parent=35 // pred_region
          %224 = dma.done %s216, 1024
        $region40: #{tpu_custom_call.1} parent=35 // pred_fallthru
          _
        %s225 = sand.u32 %s43, 1
        %s226 = scalar_lea.sflag [#allocation3], %s225
        %s227 = sand.u32 %s43, 1
        %s228 = smul.addr %s227, 64
        %s229 = scalar_lea.vmem [#allocation2], %s228
        %p230 = pneg %p56
        %p231 = pneg %p53
        %p232 = pneg %p77
        %p233 = pneg %p74
        %s234 = smul.u32 16, %s25
        %p235 = scmp.lt.s32.totalorder %s234, 47
        %s236 = scalar_select %p235, %s234, 47
        %s237 = smul.addr %s236, 8
        %s238 = scalar_lea.vmem %s2, %s237
        %p239 = pneg %p103
        %p240 = pneg %p100
        %p241 = pneg %p124
        %p242 = pneg %p121
        %p243 = pneg %p150
        %p244 = pneg %p147
        %s245 = sand.u32 %s137, 1
        %s246 = scalar_lea.sflag [#allocation4], %s245
        %s247 = sand.u32 %s137, 1
        %s248 = smul.addr %s247, 128
        %s249 = scalar_lea.vmem [#allocation5], %s248
        %s250 = smul.u32 16, %s25
        %s251 = smul.u32 16, %s25
        %p252 = scmp.lt.s32.totalorder %s251, 47
        %s253 = scalar_select %p252, %s251, 47
        %s254 = smul.addr %s253, 8
        %s255 = scalar_lea.vmem %s2, %s254
        %s256 = smul.u32 16, %s25
        %s257 = smul.u32 16, %s25
        %p258 = scmp.eq.s32.totalorder %s26, 0
        // Predicated region
        $region41: #{tpu_custom_call.1} parent=35 // pred_check
          %p259 = pneg %p258
        $region42: #{tpu_custom_call.1} parent=35 // pred_check_branch
          %261 = sbr.rel (%p259) target = $region44
        $region43: #{tpu_custom_call.1} parent=35 // pred_region
          %262 = vst [vmem:[%s249] sm:$0xff] 0.0
          %263 = vst [vmem:[%s249 + $0x8] sm:$0xff] 0.0
          %264 = vst [vmem:[%s249 + $0x10] sm:$0xff] 0.0
          %265 = vst [vmem:[%s249 + $0x18] sm:$0xff] 0.0
          %266 = vst [vmem:[%s249 + $0x20] sm:$0xff] 0.0
          %267 = vst [vmem:[%s249 + $0x28] sm:$0xff] 0.0
          %268 = vst [vmem:[%s249 + $0x30] sm:$0xff] 0.0
          %269 = vst [vmem:[%s249 + $0x38] sm:$0xff] 0.0
          %270 = vst [vmem:[%s249 + $0x40] sm:$0xff] 0.0
          %271 = vst [vmem:[%s249 + $0x48] sm:$0xff] 0.0
          %272 = vst [vmem:[%s249 + $0x50] sm:$0xff] 0.0
          %273 = vst [vmem:[%s249 + $0x58] sm:$0xff] 0.0
          %274 = vst [vmem:[%s249 + $0x60] sm:$0xff] 0.0
          %275 = vst [vmem:[%s249 + $0x68] sm:$0xff] 0.0
          %276 = vst [vmem:[%s249 + $0x70] sm:$0xff] 0.0
          %277 = vst [vmem:[%s249 + $0x78] sm:$0xff] 0.0
        $region44: #{tpu_custom_call.1} parent=35 // pred_fallthru
          _
        %s278 = smul.u32 %s26, 128
        %s279 = sshra.s32 %s278, 3
        %s280 = sand.u32 %s278, 7
        %s281 = smul.addr %s279, 4
        %s282 = scalar_lea.vmem %s1, %s281
        %v283 = vld [vmem:[%s282] sm:$0xf]
        %v284 = vld [vmem:[%s282 + $0x4] sm:$0xf]
        %v285 = vld [vmem:[%s282 + $0x8] sm:$0xf]
        %v286 = vld [vmem:[%s282 + $0xc] sm:$0xf]
        %v287 = vld [vmem:[%s282 + $0x10] sm:$0xf]
        %v288 = vld [vmem:[%s282 + $0x14] sm:$0xf]
        %v289 = vld [vmem:[%s282 + $0x18] sm:$0xf]
        %v290 = vld [vmem:[%s282 + $0x1c] sm:$0xf]
        %v291 = vld [vmem:[%s282 + $0x20] sm:$0xf]
        %v292 = vld [vmem:[%s282 + $0x24] sm:$0xf]
        %v293 = vld [vmem:[%s282 + $0x28] sm:$0xf]
        %v294 = vld [vmem:[%s282 + $0x2c] sm:$0xf]
        %v295 = vld [vmem:[%s282 + $0x30] sm:$0xf]
        %v296 = vld [vmem:[%s282 + $0x34] sm:$0xf]
        %v297 = vld [vmem:[%s282 + $0x38] sm:$0xf]
        %v298 = vld [vmem:[%s282 + $0x3c] sm:$0xf]
        %v299 = vld [vmem:[%s249] sm:$0xff]
        %v300 = vld [vmem:[%s249 + $0x8] sm:$0xff]
        %v301 = vld [vmem:[%s249 + $0x10] sm:$0xff]
        %v302 = vld [vmem:[%s249 + $0x18] sm:$0xff]
        %v303 = vld [vmem:[%s249 + $0x20] sm:$0xff]
        %v304 = vld [vmem:[%s249 + $0x28] sm:$0xff]
        %v305 = vld [vmem:[%s249 + $0x30] sm:$0xff]
        %v306 = vld [vmem:[%s249 + $0x38] sm:$0xff]
        %v307 = vld [vmem:[%s249 + $0x40] sm:$0xff]
        %v308 = vld [vmem:[%s249 + $0x48] sm:$0xff]
        %v309 = vld [vmem:[%s249 + $0x50] sm:$0xff]
        %v310 = vld [vmem:[%s249 + $0x58] sm:$0xff]
        %v311 = vld [vmem:[%s249 + $0x60] sm:$0xff]
        %v312 = vld [vmem:[%s249 + $0x68] sm:$0xff]
        %v313 = vld [vmem:[%s249 + $0x70] sm:$0xff]
        %v314 = vld [vmem:[%s249 + $0x78] sm:$0xff]
        %v315 = vld [vmem:[%s219] sm:$0xf]
        %v316 = vld [vmem:[%s219 + $0x4] sm:$0xf]
        %v317 = vld [vmem:[%s219 + $0x8] sm:$0xf]
        %v318 = vld [vmem:[%s219 + $0xc] sm:$0xf]
        %v319 = vld [vmem:[%s219 + $0x10] sm:$0xf]
        %v320 = vld [vmem:[%s219 + $0x14] sm:$0xf]
        %v321 = vld [vmem:[%s219 + $0x18] sm:$0xf]
        %v322 = vld [vmem:[%s219 + $0x1c] sm:$0xf]
        %v323 = vld [vmem:[%s219 + $0x20] sm:$0xf]
        %v324 = vld [vmem:[%s219 + $0x24] sm:$0xf]
        %v325 = vld [vmem:[%s219 + $0x28] sm:$0xf]
        %v326 = vld [vmem:[%s219 + $0x2c] sm:$0xf]
        %v327 = vld [vmem:[%s219 + $0x30] sm:$0xf]
        %v328 = vld [vmem:[%s219 + $0x34] sm:$0xf]
        %v329 = vld [vmem:[%s219 + $0x38] sm:$0xf]
        %v330 = vld [vmem:[%s219 + $0x3c] sm:$0xf]
        %v347 = vunpack.c.l.b16 %v315
        %v348 = vunpack.c.l.b16 %v316
        %v349 = vunpack.c.l.b16 %v317
        %v350 = vunpack.c.l.b16 %v318
        %v351 = vunpack.c.l.b16 %v319
        %v352 = vunpack.c.l.b16 %v320
        %v353 = vunpack.c.l.b16 %v321
        %v354 = vunpack.c.l.b16 %v322
        %v355 = vunpack.c.l.b16 %v323
        %v356 = vunpack.c.l.b16 %v324
        %v357 = vunpack.c.l.b16 %v325
        %v358 = vunpack.c.l.b16 %v326
        %v359 = vunpack.c.l.b16 %v327
        %v360 = vunpack.c.l.b16 %v328
        %v361 = vunpack.c.l.b16 %v329
        %v362 = vunpack.c.l.b16 %v330
        %v363 = vpack.c.b16 %v348, %v347
        %v364 = vpack.c.b16 %v350, %v349
        %v365 = vpack.c.b16 %v352, %v351
        %v366 = vpack.c.b16 %v354, %v353
        %v367 = vpack.c.b16 %v356, %v355
        %v368 = vpack.c.b16 %v358, %v357
        %v369 = vpack.c.b16 %v360, %v359
        %v370 = vpack.c.b16 %v362, %v361
        %v395 = vunpack.c.l.b16 %v283
        %v396 = vunpack.c.l.b16 %v284
        %v397 = vunpack.c.l.b16 %v285
        %v398 = vunpack.c.l.b16 %v286
        %v399 = vunpack.c.l.b16 %v287
        %v400 = vunpack.c.l.b16 %v288
        %v401 = vunpack.c.l.b16 %v289
        %v402 = vunpack.c.l.b16 %v290
        %v403 = vunpack.c.l.b16 %v291
        %v404 = vunpack.c.l.b16 %v292
        %v405 = vunpack.c.l.b16 %v293
        %v406 = vunpack.c.l.b16 %v294
        %v407 = vunpack.c.l.b16 %v295
        %v408 = vunpack.c.l.b16 %v296
        %v409 = vunpack.c.l.b16 %v297
        %v410 = vunpack.c.l.b16 %v298
        %v411 = vpack.c.b16 %v396, %v395
        %v412 = vpack.c.b16 %v398, %v397
        %v413 = vpack.c.b16 %v400, %v399
        %v414 = vpack.c.b16 %v402, %v401
        %v415 = vpack.c.b16 %v404, %v403
        %v416 = vpack.c.b16 %v406, %v405
        %v417 = vpack.c.b16 %v408, %v407
        %v418 = vpack.c.b16 %v410, %v409
        %427 = vmatpush.bf16.msra.mxu0 %v418
        %428 = vmatpush.bf16.msra.mxu0 %v417
        %429 = vmatpush.bf16.msra.mxu0 %v416
        %430 = vmatpush.bf16.msra.mxu0 %v415
        %431 = vmatpush.bf16.msra.mxu0 %v414
        %432 = vmatpush.bf16.msra.mxu0 %v413
        %433 = vmatpush.bf16.msra.mxu0 %v412
        %434 = vmatpush.bf16.msra.mxu0 %v411
        %435 = vmatmul.bf16.gmra.mxu0 %v363
        %v436 = vpop.f32.mrf.mxu0
        %v437 = vadd.f32 0.0, %v436
        %v438 = vpop.f32.mrf.mxu0
        %v439 = vadd.f32 0.0, %v438
        %440 = vmatmul.bf16.gmra.mxu0 %v364
        %v441 = vpop.f32.mrf.mxu0
        %v442 = vadd.f32 0.0, %v441
        %v443 = vpop.f32.mrf.mxu0
        %v444 = vadd.f32 0.0, %v443
        %445 = vmatmul.bf16.gmra.mxu0 %v365
        %v446 = vpop.f32.mrf.mxu0
        %v447 = vadd.f32 0.0, %v446
        %v448 = vpop.f32.mrf.mxu0
        %v449 = vadd.f32 0.0, %v448
        %450 = vmatmul.bf16.gmra.mxu0 %v366
        %v451 = vpop.f32.mrf.mxu0
        %v452 = vadd.f32 0.0, %v451
        %v453 = vpop.f32.mrf.mxu0
        %v454 = vadd.f32 0.0, %v453
        %455 = vmatmul.bf16.gmra.mxu0 %v367
        %v456 = vpop.f32.mrf.mxu0
        %v457 = vadd.f32 0.0, %v456
        %v458 = vpop.f32.mrf.mxu0
        %v459 = vadd.f32 0.0, %v458
        %460 = vmatmul.bf16.gmra.mxu0 %v368
        %v461 = vpop.f32.mrf.mxu0
        %v462 = vadd.f32 0.0, %v461
        %v463 = vpop.f32.mrf.mxu0
        %v464 = vadd.f32 0.0, %v463
        %465 = vmatmul.bf16.gmra.mxu0 %v369
        %v466 = vpop.f32.mrf.mxu0
        %v467 = vadd.f32 0.0, %v466
        %v468 = vpop.f32.mrf.mxu0
        %v469 = vadd.f32 0.0, %v468
        %470 = vmatmul.bf16.gmra.mxu0 %v370
        %v471 = vpop.f32.mrf.mxu0
        %v472 = vadd.f32 0.0, %v471
        %v473 = vpop.f32.mrf.mxu0
        %v474 = vadd.f32 0.0, %v473
        %475 = vdwg.mxu0
        %v476 = vadd.f32 %v299, %v437
        %v477 = vadd.f32 %v300, %v439
        %v478 = vadd.f32 %v301, %v442
        %v479 = vadd.f32 %v302, %v444
        %v480 = vadd.f32 %v303, %v447
        %v481 = vadd.f32 %v304, %v449
        %v482 = vadd.f32 %v305, %v452
        %v483 = vadd.f32 %v306, %v454
        %v484 = vadd.f32 %v307, %v457
        %v485 = vadd.f32 %v308, %v459
        %v486 = vadd.f32 %v309, %v462
        %v487 = vadd.f32 %v310, %v464
        %v488 = vadd.f32 %v311, %v467
        %v489 = vadd.f32 %v312, %v469
        %v490 = vadd.f32 %v313, %v472
        %v491 = vadd.f32 %v314, %v474
        %492 = vst [vmem:[%s249] sm:$0xff] %v476
        %493 = vst [vmem:[%s249 + $0x8] sm:$0xff] %v477
        %494 = vst [vmem:[%s249 + $0x10] sm:$0xff] %v478
        %495 = vst [vmem:[%s249 + $0x18] sm:$0xff] %v479
        %496 = vst [vmem:[%s249 + $0x20] sm:$0xff] %v480
        %497 = vst [vmem:[%s249 + $0x28] sm:$0xff] %v481
        %498 = vst [vmem:[%s249 + $0x30] sm:$0xff] %v482
        %499 = vst [vmem:[%s249 + $0x38] sm:$0xff] %v483
        %500 = vst [vmem:[%s249 + $0x40] sm:$0xff] %v484
        %501 = vst [vmem:[%s249 + $0x48] sm:$0xff] %v485
        %502 = vst [vmem:[%s249 + $0x50] sm:$0xff] %v486
        %503 = vst [vmem:[%s249 + $0x58] sm:$0xff] %v487
        %504 = vst [vmem:[%s249 + $0x60] sm:$0xff] %v488
        %505 = vst [vmem:[%s249 + $0x68] sm:$0xff] %v489
        %506 = vst [vmem:[%s249 + $0x70] sm:$0xff] %v490
        %507 = vst [vmem:[%s249 + $0x78] sm:$0xff] %v491
        %p508 = scmp.eq.s32.totalorder %s26, 2
        // Predicated region
        $region45: #{tpu_custom_call.1} parent=35 // pred_check
          %p509 = pneg %p508
        $region46: #{tpu_custom_call.1} parent=35 // pred_check_branch
          %511 = sbr.rel (%p509) target = $region48
        $region47: #{tpu_custom_call.1} parent=35 // pred_region
          %v512 = vld [vmem:[%s255] sm:$0xff]
          %v513 = vld [vmem:[%s255 + $0x8] sm:$0xff]
          %v514 = vld [vmem:[%s255 + $0x10] sm:$0xff]
          %v515 = vld [vmem:[%s255 + $0x18] sm:$0xff]
          %v516 = vld [vmem:[%s255 + $0x20] sm:$0xff]
          %v517 = vld [vmem:[%s255 + $0x28] sm:$0xff]
          %v518 = vld [vmem:[%s255 + $0x30] sm:$0xff]
          %v519 = vld [vmem:[%s255 + $0x38] sm:$0xff]
          %v520 = vld [vmem:[%s255 + $0x40] sm:$0xff]
          %v521 = vld [vmem:[%s255 + $0x48] sm:$0xff]
          %v522 = vld [vmem:[%s255 + $0x50] sm:$0xff]
          %v523 = vld [vmem:[%s255 + $0x58] sm:$0xff]
          %v524 = vld [vmem:[%s255 + $0x60] sm:$0xff]
          %v525 = vld [vmem:[%s255 + $0x68] sm:$0xff]
          %v526 = vld [vmem:[%s255 + $0x70] sm:$0xff]
          %v527 = vld [vmem:[%s255 + $0x78] sm:$0xff]
          %vm528 = vcmp.gt.f32.partialorder %v512, 0.0
          %vm529 = vcmp.gt.f32.partialorder %v513, 0.0
          %vm530 = vcmp.gt.f32.partialorder %v514, 0.0
          %vm531 = vcmp.gt.f32.partialorder %v515, 0.0
          %vm532 = vcmp.gt.f32.partialorder %v516, 0.0
          %vm533 = vcmp.gt.f32.partialorder %v517, 0.0
          %vm534 = vcmp.gt.f32.partialorder %v518, 0.0
          %vm535 = vcmp.gt.f32.partialorder %v519, 0.0
          %vm536 = vcmp.gt.f32.partialorder %v520, 0.0
          %vm537 = vcmp.gt.f32.partialorder %v521, 0.0
          %vm538 = vcmp.gt.f32.partialorder %v522, 0.0
          %vm539 = vcmp.gt.f32.partialorder %v523, 0.0
          %vm540 = vcmp.gt.f32.partialorder %v524, 0.0
          %vm541 = vcmp.gt.f32.partialorder %v525, 0.0
          %vm542 = vcmp.gt.f32.partialorder %v526, 0.0
          %vm543 = vcmp.gt.f32.partialorder %v527, 0.0
          %v544 = vmul.f32 %v512, %v512
          %v545 = vmul.f32 %v513, %v513
          %v546 = vmul.f32 %v514, %v514
          %v547 = vmul.f32 %v515, %v515
          %v548 = vmul.f32 %v516, %v516
          %v549 = vmul.f32 %v517, %v517
          %v550 = vmul.f32 %v518, %v518
          %v551 = vmul.f32 %v519, %v519
          %v552 = vmul.f32 %v520, %v520
          %v553 = vmul.f32 %v521, %v521
          %v554 = vmul.f32 %v522, %v522
          %v555 = vmul.f32 %v523, %v523
          %v556 = vmul.f32 %v524, %v524
          %v557 = vmul.f32 %v525, %v525
          %v558 = vmul.f32 %v526, %v526
          %v559 = vmul.f32 %v527, %v527
          %v560 = vrcp.pop %v544
          %v561 = vmul.f32 %v544, %v560
          %v562 = vsub.f32 1.0, %v561
          %v563 = vmul.f32 %v560, %v562
          %v564 = vadd.f32 %v560, %v563
          %vm565 = vweird.f32 %v544
          %vm566 = vweird.f32 %v560
          %vm567 = vmor %vm565, %vm566
          %v568 = vsel %vm567, %v560, %v564
          %v569 = vand.u32 2147483647, %v544
          %vm570 = vcmp.eq.f32.partialorder %v569, 8.507059e+37
          %v571 = vand.u32 %v544, 2147483648
          %v572 = vor.u32 1.1754944e-38, %v571
          %v573 = vsel %vm570, %v572, %v568
          %v574 = vmul.f32 1.0, %v573
          %v575 = vrcp.pop %v545
          %v576 = vmul.f32 %v545, %v575
          %v577 = vsub.f32 1.0, %v576
          %v578 = vmul.f32 %v575, %v577
          %v579 = vadd.f32 %v575, %v578
          %vm580 = vweird.f32 %v545
          %vm581 = vweird.f32 %v575
          %vm582 = vmor %vm580, %vm581
          %v583 = vsel %vm582, %v575, %v579
          %v584 = vand.u32 2147483647, %v545
          %vm585 = vcmp.eq.f32.partialorder %v584, 8.507059e+37
          %v586 = vand.u32 %v545, 2147483648
          %v587 = vor.u32 1.1754944e-38, %v586
          %v588 = vsel %vm585, %v587, %v583
          %v589 = vmul.f32 1.0, %v588
          %v590 = vrcp.pop %v546
          %v591 = vmul.f32 %v546, %v590
          %v592 = vsub.f32 1.0, %v591
          %v593 = vmul.f32 %v590, %v592
          %v594 = vadd.f32 %v590, %v593
          %vm595 = vweird.f32 %v546
          %vm596 = vweird.f32 %v590
          %vm597 = vmor %vm595, %vm596
          %v598 = vsel %vm597, %v590, %v594
          %v599 = vand.u32 2147483647, %v546
          %vm600 = vcmp.eq.f32.partialorder %v599, 8.507059e+37
          %v601 = vand.u32 %v546, 2147483648
          %v602 = vor.u32 1.1754944e-38, %v601
          %v603 = vsel %vm600, %v602, %v598
          %v604 = vmul.f32 1.0, %v603
          %v605 = vrcp.pop %v547
          %v606 = vmul.f32 %v547, %v605
          %v607 = vsub.f32 1.0, %v606
          %v608 = vmul.f32 %v605, %v607
          %v609 = vadd.f32 %v605, %v608
          %vm610 = vweird.f32 %v547
          %vm611 = vweird.f32 %v605
          %vm612 = vmor %vm610, %vm611
          %v613 = vsel %vm612, %v605, %v609
          %v614 = vand.u32 2147483647, %v547
          %vm615 = vcmp.eq.f32.partialorder %v614, 8.507059e+37
          %v616 = vand.u32 %v547, 2147483648
          %v617 = vor.u32 1.1754944e-38, %v616
          %v618 = vsel %vm615, %v617, %v613
          %v619 = vmul.f32 1.0, %v618
          %v620 = vrcp.pop %v548
          %v621 = vmul.f32 %v548, %v620
          %v622 = vsub.f32 1.0, %v621
          %v623 = vmul.f32 %v620, %v622
          %v624 = vadd.f32 %v620, %v623
          %vm625 = vweird.f32 %v548
          %vm626 = vweird.f32 %v620
          %vm627 = vmor %vm625, %vm626
          %v628 = vsel %vm627, %v620, %v624
          %v629 = vand.u32 2147483647, %v548
          %vm630 = vcmp.eq.f32.partialorder %v629, 8.507059e+37
          %v631 = vand.u32 %v548, 2147483648
          %v632 = vor.u32 1.1754944e-38, %v631
          %v633 = vsel %vm630, %v632, %v628
          %v634 = vmul.f32 1.0, %v633
          %v635 = vrcp.pop %v549
          %v636 = vmul.f32 %v549, %v635
          %v637 = vsub.f32 1.0, %v636
          %v638 = vmul.f32 %v635, %v637
          %v639 = vadd.f32 %v635, %v638
          %vm640 = vweird.f32 %v549
          %vm641 = vweird.f32 %v635
          %vm642 = vmor %vm640, %vm641
          %v643 = vsel %vm642, %v635, %v639
          %v644 = vand.u32 2147483647, %v549
          %vm645 = vcmp.eq.f32.partialorder %v644, 8.507059e+37
          %v646 = vand.u32 %v549, 2147483648
          %v647 = vor.u32 1.1754944e-38, %v646
          %v648 = vsel %vm645, %v647, %v643
          %v649 = vmul.f32 1.0, %v648
          %v650 = vrcp.pop %v550
          %v651 = vmul.f32 %v550, %v650
          %v652 = vsub.f32 1.0, %v651
          %v653 = vmul.f32 %v650, %v652
          %v654 = vadd.f32 %v650, %v653
          %vm655 = vweird.f32 %v550
          %vm656 = vweird.f32 %v650
          %vm657 = vmor %vm655, %vm656
          %v658 = vsel %vm657, %v650, %v654
          %v659 = vand.u32 2147483647, %v550
          %vm660 = vcmp.eq.f32.partialorder %v659, 8.507059e+37
          %v661 = vand.u32 %v550, 2147483648
          %v662 = vor.u32 1.1754944e-38, %v661
          %v663 = vsel %vm660, %v662, %v658
          %v664 = vmul.f32 1.0, %v663
          %v665 = vrcp.pop %v551
          %v666 = vmul.f32 %v551, %v665
          %v667 = vsub.f32 1.0, %v666
          %v668 = vmul.f32 %v665, %v667
          %v669 = vadd.f32 %v665, %v668
          %vm670 = vweird.f32 %v551
          %vm671 = vweird.f32 %v665
          %vm672 = vmor %vm670, %vm671
          %v673 = vsel %vm672, %v665, %v669
          %v674 = vand.u32 2147483647, %v551
          %vm675 = vcmp.eq.f32.partialorder %v674, 8.507059e+37
          %v676 = vand.u32 %v551, 2147483648
          %v677 = vor.u32 1.1754944e-38, %v676
          %v678 = vsel %vm675, %v677, %v673
          %v679 = vmul.f32 1.0, %v678
          %v680 = vrcp.pop %v552
          %v681 = vmul.f32 %v552, %v680
          %v682 = vsub.f32 1.0, %v681
          %v683 = vmul.f32 %v680, %v682
          %v684 = vadd.f32 %v680, %v683
          %vm685 = vweird.f32 %v552
          %vm686 = vweird.f32 %v680
          %vm687 = vmor %vm685, %vm686
          %v688 = vsel %vm687, %v680, %v684
          %v689 = vand.u32 2147483647, %v552
          %vm690 = vcmp.eq.f32.partialorder %v689, 8.507059e+37
          %v691 = vand.u32 %v552, 2147483648
          %v692 = vor.u32 1.1754944e-38, %v691
          %v693 = vsel %vm690, %v692, %v688
          %v694 = vmul.f32 1.0, %v693
          %v695 = vrcp.pop %v553
          %v696 = vmul.f32 %v553, %v695
          %v697 = vsub.f32 1.0, %v696
          %v698 = vmul.f32 %v695, %v697
          %v699 = vadd.f32 %v695, %v698
          %vm700 = vweird.f32 %v553
          %vm701 = vweird.f32 %v695
          %vm702 = vmor %vm700, %vm701
          %v703 = vsel %vm702, %v695, %v699
          %v704 = vand.u32 2147483647, %v553
          %vm705 = vcmp.eq.f32.partialorder %v704, 8.507059e+37
          %v706 = vand.u32 %v553, 2147483648
          %v707 = vor.u32 1.1754944e-38, %v706
          %v708 = vsel %vm705, %v707, %v703
          %v709 = vmul.f32 1.0, %v708
          %v710 = vrcp.pop %v554
          %v711 = vmul.f32 %v554, %v710
          %v712 = vsub.f32 1.0, %v711
          %v713 = vmul.f32 %v710, %v712
          %v714 = vadd.f32 %v710, %v713
          %vm715 = vweird.f32 %v554
          %vm716 = vweird.f32 %v710
          %vm717 = vmor %vm715, %vm716
          %v718 = vsel %vm717, %v710, %v714
          %v719 = vand.u32 2147483647, %v554
          %vm720 = vcmp.eq.f32.partialorder %v719, 8.507059e+37
          %v721 = vand.u32 %v554, 2147483648
          %v722 = vor.u32 1.1754944e-38, %v721
          %v723 = vsel %vm720, %v722, %v718
          %v724 = vmul.f32 1.0, %v723
          %v725 = vrcp.pop %v555
          %v726 = vmul.f32 %v555, %v725
          %v727 = vsub.f32 1.0, %v726
          %v728 = vmul.f32 %v725, %v727
          %v729 = vadd.f32 %v725, %v728
          %vm730 = vweird.f32 %v555
          %vm731 = vweird.f32 %v725
          %vm732 = vmor %vm730, %vm731
          %v733 = vsel %vm732, %v725, %v729
          %v734 = vand.u32 2147483647, %v555
          %vm735 = vcmp.eq.f32.partialorder %v734, 8.507059e+37
          %v736 = vand.u32 %v555, 2147483648
          %v737 = vor.u32 1.1754944e-38, %v736
          %v738 = vsel %vm735, %v737, %v733
          %v739 = vmul.f32 1.0, %v738
          %v740 = vrcp.pop %v556
          %v741 = vmul.f32 %v556, %v740
          %v742 = vsub.f32 1.0, %v741
          %v743 = vmul.f32 %v740, %v742
          %v744 = vadd.f32 %v740, %v743
          %vm745 = vweird.f32 %v556
          %vm746 = vweird.f32 %v740
          %vm747 = vmor %vm745, %vm746
          %v748 = vsel %vm747, %v740, %v744
          %v749 = vand.u32 2147483647, %v556
          %vm750 = vcmp.eq.f32.partialorder %v749, 8.507059e+37
          %v751 = vand.u32 %v556, 2147483648
          %v752 = vor.u32 1.1754944e-38, %v751
          %v753 = vsel %vm750, %v752, %v748
          %v754 = vmul.f32 1.0, %v753
          %v755 = vrcp.pop %v557
          %v756 = vmul.f32 %v557, %v755
          %v757 = vsub.f32 1.0, %v756
          %v758 = vmul.f32 %v755, %v757
          %v759 = vadd.f32 %v755, %v758
          %vm760 = vweird.f32 %v557
          %vm761 = vweird.f32 %v755
          %vm762 = vmor %vm760, %vm761
          %v763 = vsel %vm762, %v755, %v759
          %v764 = vand.u32 2147483647, %v557
          %vm765 = vcmp.eq.f32.partialorder %v764, 8.507059e+37
          %v766 = vand.u32 %v557, 2147483648
          %v767 = vor.u32 1.1754944e-38, %v766
          %v768 = vsel %vm765, %v767, %v763
          %v769 = vmul.f32 1.0, %v768
          %v770 = vrcp.pop %v558
          %v771 = vmul.f32 %v558, %v770
          %v772 = vsub.f32 1.0, %v771
          %v773 = vmul.f32 %v770, %v772
          %v774 = vadd.f32 %v770, %v773
          %vm775 = vweird.f32 %v558
          %vm776 = vweird.f32 %v770
          %vm777 = vmor %vm775, %vm776
          %v778 = vsel %vm777, %v770, %v774
          %v779 = vand.u32 2147483647, %v558
          %vm780 = vcmp.eq.f32.partialorder %v779, 8.507059e+37
          %v781 = vand.u32 %v558, 2147483648
          %v782 = vor.u32 1.1754944e-38, %v781
          %v783 = vsel %vm780, %v782, %v778
          %v784 = vmul.f32 1.0, %v783
          %v785 = vrcp.pop %v559
          %v786 = vmul.f32 %v559, %v785
          %v787 = vsub.f32 1.0, %v786
          %v788 = vmul.f32 %v785, %v787
          %v789 = vadd.f32 %v785, %v788
          %vm790 = vweird.f32 %v559
          %vm791 = vweird.f32 %v785
          %vm792 = vmor %vm790, %vm791
          %v793 = vsel %vm792, %v785, %v789
          %v794 = vand.u32 2147483647, %v559
          %vm795 = vcmp.eq.f32.partialorder %v794, 8.507059e+37
          %v796 = vand.u32 %v559, 2147483648
          %v797 = vor.u32 1.1754944e-38, %v796
          %v798 = vsel %vm795, %v797, %v793
          %v799 = vmul.f32 1.0, %v798
          %v800 = vsel %vm528, %v574, 0.0
          %v801 = vsel %vm529, %v589, 0.0
          %v802 = vsel %vm530, %v604, 0.0
          %v803 = vsel %vm531, %v619, 0.0
          %v804 = vsel %vm532, %v634, 0.0
          %v805 = vsel %vm533, %v649, 0.0
          %v806 = vsel %vm534, %v664, 0.0
          %v807 = vsel %vm535, %v679, 0.0
          %v808 = vsel %vm536, %v694, 0.0
          %v809 = vsel %vm537, %v709, 0.0
          %v810 = vsel %vm538, %v724, 0.0
          %v811 = vsel %vm539, %v739, 0.0
          %v812 = vsel %vm540, %v754, 0.0
          %v813 = vsel %vm541, %v769, 0.0
          %v814 = vsel %vm542, %v784, 0.0
          %v815 = vsel %vm543, %v799, 0.0
          %v816 = vld [vmem:[%s249] sm:$0xff]
          %v817 = vld [vmem:[%s249 + $0x8] sm:$0xff]
          %v818 = vld [vmem:[%s249 + $0x10] sm:$0xff]
          %v819 = vld [vmem:[%s249 + $0x18] sm:$0xff]
          %v820 = vld [vmem:[%s249 + $0x20] sm:$0xff]
          %v821 = vld [vmem:[%s249 + $0x28] sm:$0xff]
          %v822 = vld [vmem:[%s249 + $0x30] sm:$0xff]
          %v823 = vld [vmem:[%s249 + $0x38] sm:$0xff]
          %v824 = vld [vmem:[%s249 + $0x40] sm:$0xff]
          %v825 = vld [vmem:[%s249 + $0x48] sm:$0xff]
          %v826 = vld [vmem:[%s249 + $0x50] sm:$0xff]
          %v827 = vld [vmem:[%s249 + $0x58] sm:$0xff]
          %v828 = vld [vmem:[%s249 + $0x60] sm:$0xff]
          %v829 = vld [vmem:[%s249 + $0x68] sm:$0xff]
          %v830 = vld [vmem:[%s249 + $0x70] sm:$0xff]
          %v831 = vld [vmem:[%s249 + $0x78] sm:$0xff]
          %833 = vset.pattern.permute.xlu0 0
          %834 = vperm.xlu0 %833, %v512
          %v835 = vpop.permute.xlu0 %834
          %838 = vset.pattern.permute.xlu0 0
          %839 = vperm.xlu0 %838, %v513
          %v840 = vpop.permute.xlu0 %839
          %843 = vset.pattern.permute.xlu0 0
          %844 = vperm.xlu0 %843, %v514
          %v845 = vpop.permute.xlu0 %844
          %848 = vset.pattern.permute.xlu0 0
          %849 = vperm.xlu0 %848, %v515
          %v850 = vpop.permute.xlu0 %849
          %853 = vset.pattern.permute.xlu0 0
          %854 = vperm.xlu0 %853, %v516
          %v855 = vpop.permute.xlu0 %854
          %858 = vset.pattern.permute.xlu0 0
          %859 = vperm.xlu0 %858, %v517
          %v860 = vpop.permute.xlu0 %859
          %863 = vset.pattern.permute.xlu0 0
          %864 = vperm.xlu0 %863, %v518
          %v865 = vpop.permute.xlu0 %864
          %868 = vset.pattern.permute.xlu0 0
          %869 = vperm.xlu0 %868, %v519
          %v870 = vpop.permute.xlu0 %869
          %873 = vset.pattern.permute.xlu0 0
          %874 = vperm.xlu0 %873, %v520
          %v875 = vpop.permute.xlu0 %874
          %878 = vset.pattern.permute.xlu0 0
          %879 = vperm.xlu0 %878, %v521
          %v880 = vpop.permute.xlu0 %879
          %883 = vset.pattern.permute.xlu0 0
          %884 = vperm.xlu0 %883, %v522
          %v885 = vpop.permute.xlu0 %884
          %888 = vset.pattern.permute.xlu0 0
          %889 = vperm.xlu0 %888, %v523
          %v890 = vpop.permute.xlu0 %889
          %893 = vset.pattern.permute.xlu0 0
          %894 = vperm.xlu0 %893, %v524
          %v895 = vpop.permute.xlu0 %894
          %898 = vset.pattern.permute.xlu0 0
          %899 = vperm.xlu0 %898, %v525
          %v900 = vpop.permute.xlu0 %899
          %903 = vset.pattern.permute.xlu0 0
          %904 = vperm.xlu0 %903, %v526
          %v905 = vpop.permute.xlu0 %904
          %908 = vset.pattern.permute.xlu0 0
          %909 = vperm.xlu0 %908, %v527
          %v910 = vpop.permute.xlu0 %909
          %v912 = vmul.f32 %v816, %v835
          %v913 = vmul.f32 %v817, %v840
          %v914 = vmul.f32 %v818, %v845
          %v915 = vmul.f32 %v819, %v850
          %v916 = vmul.f32 %v820, %v855
          %v917 = vmul.f32 %v821, %v860
          %v918 = vmul.f32 %v822, %v865
          %v919 = vmul.f32 %v823, %v870
          %v920 = vmul.f32 %v824, %v875
          %v921 = vmul.f32 %v825, %v880
          %v922 = vmul.f32 %v826, %v885
          %v923 = vmul.f32 %v827, %v890
          %v924 = vmul.f32 %v828, %v895
          %v925 = vmul.f32 %v829, %v900
          %v926 = vmul.f32 %v830, %v905
          %v927 = vmul.f32 %v831, %v910
          %v928 = vld [vmem:[%s3] sm:$0x1]
          %930 = vset.pattern.permute.xlu0 0
          %931 = vperm.xlu0 %930, %v800
          %v932 = vpop.permute.xlu0 %931
          %935 = vset.pattern.permute.xlu0 0
          %936 = vperm.xlu0 %935, %v801
          %v937 = vpop.permute.xlu0 %936
          %940 = vset.pattern.permute.xlu0 0
          %941 = vperm.xlu0 %940, %v802
          %v942 = vpop.permute.xlu0 %941
          %945 = vset.pattern.permute.xlu0 0
          %946 = vperm.xlu0 %945, %v803
          %v947 = vpop.permute.xlu0 %946
          %950 = vset.pattern.permute.xlu0 0
          %951 = vperm.xlu0 %950, %v804
          %v952 = vpop.permute.xlu0 %951
          %955 = vset.pattern.permute.xlu0 0
          %956 = vperm.xlu0 %955, %v805
          %v957 = vpop.permute.xlu0 %956
          %960 = vset.pattern.permute.xlu0 0
          %961 = vperm.xlu0 %960, %v806
          %v962 = vpop.permute.xlu0 %961
          %965 = vset.pattern.permute.xlu0 0
          %966 = vperm.xlu0 %965, %v807
          %v967 = vpop.permute.xlu0 %966
          %970 = vset.pattern.permute.xlu0 0
          %971 = vperm.xlu0 %970, %v808
          %v972 = vpop.permute.xlu0 %971
          %975 = vset.pattern.permute.xlu0 0
          %976 = vperm.xlu0 %975, %v809
          %v977 = vpop.permute.xlu0 %976
          %980 = vset.pattern.permute.xlu0 0
          %981 = vperm.xlu0 %980, %v810
          %v982 = vpop.permute.xlu0 %981
          %985 = vset.pattern.permute.xlu0 0
          %986 = vperm.xlu0 %985, %v811
          %v987 = vpop.permute.xlu0 %986
          %990 = vset.pattern.permute.xlu0 0
          %991 = vperm.xlu0 %990, %v812
          %v992 = vpop.permute.xlu0 %991
          %995 = vset.pattern.permute.xlu0 0
          %996 = vperm.xlu0 %995, %v813
          %v997 = vpop.permute.xlu0 %996
          %1000 = vset.pattern.permute.xlu0 0
          %1001 = vperm.xlu0 %1000, %v814
          %v1002 = vpop.permute.xlu0 %1001
          %1005 = vset.pattern.permute.xlu0 0
          %1006 = vperm.xlu0 %1005, %v815
          %v1007 = vpop.permute.xlu0 %1006
          %v1010 = vperm.slane %v928, 0
          %v1012 = vmul.f32 %v932, %v1010
          %v1013 = vmul.f32 %v937, %v1010
          %v1014 = vmul.f32 %v942, %v1010
          %v1015 = vmul.f32 %v947, %v1010
          %v1016 = vmul.f32 %v952, %v1010
          %v1017 = vmul.f32 %v957, %v1010
          %v1018 = vmul.f32 %v962, %v1010
          %v1019 = vmul.f32 %v967, %v1010
          %v1020 = vmul.f32 %v972, %v1010
          %v1021 = vmul.f32 %v977, %v1010
          %v1022 = vmul.f32 %v982, %v1010
          %v1023 = vmul.f32 %v987, %v1010
          %v1024 = vmul.f32 %v992, %v1010
          %v1025 = vmul.f32 %v997, %v1010
          %v1026 = vmul.f32 %v1002, %v1010
          %v1027 = vmul.f32 %v1007, %v1010
          %v1028 = vadd.f32 %v912, %v1012
          %v1029 = vadd.f32 %v913, %v1013
          %v1030 = vadd.f32 %v914, %v1014
          %v1031 = vadd.f32 %v915, %v1015
          %v1032 = vadd.f32 %v916, %v1016
          %v1033 = vadd.f32 %v917, %v1017
          %v1034 = vadd.f32 %v918, %v1018
          %v1035 = vadd.f32 %v919, %v1019
          %v1036 = vadd.f32 %v920, %v1020
          %v1037 = vadd.f32 %v921, %v1021
          %v1038 = vadd.f32 %v922, %v1022
          %v1039 = vadd.f32 %v923, %v1023
          %v1040 = vadd.f32 %v924, %v1024
          %v1041 = vadd.f32 %v925, %v1025
          %v1042 = vadd.f32 %v926, %v1026
          %v1043 = vadd.f32 %v927, %v1027
          %1044 = vst [vmem:[%s249] sm:$0xff] %v1028
          %1045 = vst [vmem:[%s249 + $0x8] sm:$0xff] %v1029
          %1046 = vst [vmem:[%s249 + $0x10] sm:$0xff] %v1030
          %1047 = vst [vmem:[%s249 + $0x18] sm:$0xff] %v1031
          %1048 = vst [vmem:[%s249 + $0x20] sm:$0xff] %v1032
          %1049 = vst [vmem:[%s249 + $0x28] sm:$0xff] %v1033
          %1050 = vst [vmem:[%s249 + $0x30] sm:$0xff] %v1034
          %1051 = vst [vmem:[%s249 + $0x38] sm:$0xff] %v1035
          %1052 = vst [vmem:[%s249 + $0x40] sm:$0xff] %v1036
          %1053 = vst [vmem:[%s249 + $0x48] sm:$0xff] %v1037
          %1054 = vst [vmem:[%s249 + $0x50] sm:$0xff] %v1038
          %1055 = vst [vmem:[%s249 + $0x58] sm:$0xff] %v1039
          %1056 = vst [vmem:[%s249 + $0x60] sm:$0xff] %v1040
          %1057 = vst [vmem:[%s249 + $0x68] sm:$0xff] %v1041
          %1058 = vst [vmem:[%s249 + $0x70] sm:$0xff] %v1042
          %1059 = vst [vmem:[%s249 + $0x78] sm:$0xff] %v1043
        $region48: #{tpu_custom_call.1} parent=35 // pred_fallthru
          _
        %s1060 = sand.u32 %s137, 1
        %s1061 = scalar_lea.sflag [#allocation4], %s1060
        %s1062 = sand.u32 %s137, 1
        %s1063 = smul.addr %s1062, 128
        %s1064 = scalar_lea.vmem [#allocation5], %s1063
        // Predicated region
        $region49: #{tpu_custom_call.1} parent=35 // pred_check
          %p1065 = pneg %p147
        $region50: #{tpu_custom_call.1} parent=35 // pred_check_branch
          %1067 = sbr.rel (%p1065) target = $region52
        $region51: #{tpu_custom_call.1} parent=35 // pred_region
          %s1068 = smul.u32 16, %s25
          %1070 = vsyncadd %s1061, 0
          %s1071 = smul.addr %s1068, 8
          %s1072 = scalar_lea.hbm %s4, %s1071
          %s1073 = sshll.u32 %s1064, 4
          %s1074 = int_to_ptr.vmem [resolvable:$true] %s1073
          %s1075 = sshll.u32 %s1072, 4
          %s1076 = int_to_ptr.hbm [resolvable:$true] %s1075
          %1081 = dma.vmem_to_hbm [thread:$0]  %s1074, 2048, %s1076, %s1061, 128, 128, 8
        $region52: #{tpu_custom_call.1} parent=35 // pred_fallthru
          _
      $region36: #{tpu_custom_call.1} parent=5 // pred_fallthru
        _
      %p1082 = scmp.le.s32.totalorder 2, %s16
      // Predicated region
      $region53: #{tpu_custom_call.1} parent=5 // pred_check
        %p1083 = pneg %p1082
      $region54: #{tpu_custom_call.1} parent=5 // pred_check_branch
        %1085 = sbr.rel (%p1083) target = $region56
      $region55: #{tpu_custom_call.1} parent=5 // pred_region
        %s1086 = ssub.s32 %s16, 2
        // Predicated region
        $region57: #{tpu_custom_call.1} parent=55 // pred_check
          %p1087 = pneg %p153
        $region58: #{tpu_custom_call.1} parent=55 // pred_check_branch
          %1089 = sbr.rel (%p1087) target = $region60
        $region59: #{tpu_custom_call.1} parent=55 // pred_region
          %s1090 = sand.u32 %s138, 1
          %s1091 = scalar_lea.sflag [#allocation4], %s1090
          %s1092 = sand.u32 %s138, 1
          %s1093 = smul.addr %s1092, 128
          %s1094 = scalar_lea.vmem [#allocation5], %s1093
          %1096 = dma.done %s1091, 2048
        $region60: #{tpu_custom_call.1} parent=55 // pred_fallthru
          _
      $region56: #{tpu_custom_call.1} parent=5 // pred_fallthru
        _
    $region6: #{tpu_custom_call.1} parent=1 // loop_footer
      %s20 = sadd.s32 1, %s16
    $region7: #{tpu_custom_call.1} parent=1 // loop_footer_branch
      %15 = sbr.rel target = $region3
    $region8: #{tpu_custom_call.1} parent=1 // loop_exit
      _
    %1097 = vsyncpa [#allocation3], 1
    %s1098 = scalar_lea.sflag [#allocation3], 1
    %1099 = vsyncpa %s1098, 1
    %1100 = vsyncpa [#allocation4], 1
    %s1101 = scalar_lea.sflag [#allocation4], 1
    %1102 = vsyncpa %s1101, 1

</llo_original>
